<compile_context>
chip_gen: v5e
topology: v5e:2x2
jax: 0.10.0
libtpu: 0.0.40
codegen_flags: <defaults>
</compile_context>

<pallas_src>
import jax
import jax.numpy as jnp
from jax import lax
from jax.experimental import pallas as pl
from jax.experimental.pallas import tpu as pltpu


def _round_up(n, m):
    return ((n + m - 1) // m) * m


# Contract the last dim of both operands:  out = lhs @ rhs.T
_NT_DIMS = (((1,), (1,)), ((), ()))


def _qnet_kernel(x_ref, w1_ref, b1_ref, w2_ref, b2_ref, w3_ref, b3_ref,
                 w4_ref, b4p1_ref, o_ref):
    """One row tile of the Qnet forward.

    x_ref    : (TM, D)  f32 input rows (features + trailing ws_tag column)
    w1_ref   : (D, H)   bf16, last input row zero-padded (ws column ignored)
    w2_ref   : (H, H)   bf16
    w3_ref   : (H, H2)  bf16
    b1..b3   : f32 biases, shape (1, dout)
    w4_ref   : (1, H2)  bf16 final-layer weight row
    b4p1_ref : (1, 1)   f32 == b4 + 1.0 (folded constant)
    o_ref    : (1, TM)  lane-dense output row: (mlp(feats) + 1) * ws_tag
    """
    d_full = x_ref.shape[1]
    x = x_ref[...]                                   # (TM, D) f32

    # Hidden layers: bf16 MXU operands, f32 accumulation; bias/ReLU in f32.
    h = jnp.dot(x.astype(jnp.bfloat16), w1_ref[...],
                preferred_element_type=jnp.float32) + b1_ref[...]
    h = jnp.maximum(h, 0.0)
    h = jnp.dot(h.astype(jnp.bfloat16), w2_ref[...],
                preferred_element_type=jnp.float32) + b2_ref[...]
    h = jnp.maximum(h, 0.0)
    h = jnp.dot(h.astype(jnp.bfloat16), w3_ref[...],
                preferred_element_type=jnp.float32) + b3_ref[...]
    h = jnp.maximum(h, 0.0)                          # (TM, H2) f32

    # Final Linear(H2 -> 1) as w4_row @ h^T: lane-dense (1, TM) result, no
    # (TM, 1) column in the output path, no masked stores, no relayout.
    y_row = lax.dot_general(w4_ref[...], h.astype(jnp.bfloat16),
                            dimension_numbers=_NT_DIMS,
                            preferred_element_type=jnp.float32)   # (1, TM)

    # ws_tag (last column of x) made lane-dense via an exact f32 transpose of
    # the (TM, 1) column -> (1, TM).  XLU work only; zero MXU pushes.
    ws_row = jnp.transpose(x[:, d_full - 1:d_full])               # (1, TM)

    # (y + 1) * ws_tag, with bias b4 folded into the +1 constant.
    o_ref[...] = (y_row + b4p1_ref[...]) * ws_row


def init_qnet_params(key, input_size, hidden_size):
    """Deterministic synthetic parameters matching the PyTorch module shapes."""
    f = input_size - 1
    dims = [(f, hidden_size),
            (hidden_size, hidden_size),
            (hidden_size, hidden_size // 2),
            (hidden_size // 2, 1)]
    params = []
    for (din, dout) in dims:
        key, kw, kb = jax.random.split(key, 3)
        w = (jax.random.normal(kw, (din, dout), jnp.float32) *
             (1.0 / jnp.sqrt(jnp.float32(din))))
        b = jax.random.normal(kb, (1, dout), jnp.float32) * 0.01
        params.extend([w, b])
    return tuple(params)


def _prepare_kernel_params(params):
    """bf16 matmul operands, zero-padded w1, (1, H2) final row, folded b4+1."""
    w1, b1, w2, b2, w3, b3, w4, b4 = params
    h = w1.shape[1]
    h2 = w4.shape[0]
    # Extra zero input row so the fused (TM, D) block (with ws_tag column)
    # feeds the first matmul directly; the ws column contributes nothing.
    w1p = jnp.concatenate([w1, jnp.zeros((1, h), w1.dtype)], axis=0)
    return (w1p.astype(jnp.bfloat16), b1.astype(jnp.float32),
            w2.astype(jnp.bfloat16), b2.astype(jnp.float32),
            w3.astype(jnp.bfloat16), b3.astype(jnp.float32),
            w4.reshape(1, h2).astype(jnp.bfloat16),
            (b4 + 1.0).reshape(1, 1).astype(jnp.float32))


@jax.jit
def qnet_forward(x, params):
    """Qnet.forward(x).  x: (B, S, input_size) or (S, input_size) float32."""
    if x.ndim == 2:
        x = x[None]                      # torch.unsqueeze(x, dim=0)
    B, S, D = x.shape
    N = B * S
    x2 = x.reshape(N, D)                 # contiguous reshape, no copy

    # Row tile: multiple of 128 (lane-dense output), capped at 2048, and
    # sized so the grid has >= 2 steps whenever N allows (v7x megacore).
    TM = min(2048, _round_up(pl.cdiv(N, 2), 128))

    # Only tiny inputs (N < 128) are padded to one full tile (negligible).
    # Larger N uses a partial last block: its garbage tail rows only produce
    # output lanes >= N, which are sliced away (rows are independent).
    if N < TM:
        x2 = jnp.pad(x2, ((0, TM - N), (0, 0)))   # zero rows: ws=0 -> out=0
    G = pl.cdiv(max(N, TM), TM)
    N_out = G * TM                       # whole output tiles -> unmasked stores

    w1p, b1, w2b, b2, w3b, b3, w4r, b4p1 = _prepare_kernel_params(params)
    weight_args = (w1p, b1, w2b, b2, w3b, b3, w4r, b4p1)

    H = w1p.shape[1]
    H2 = w3b.shape[1]

    const2d = lambda a: pl.BlockSpec(a.shape, lambda i: (0, 0))

    flops = 2 * N_out * (D * H + H * H + H * H2 + H2) + 4 * N_out
    param_bytes = sum(int(p.size) * p.dtype.itemsize for p in weight_args)
    bytes_accessed = int(x2.size) * 4 + N_out * 4 + param_bytes

    out = pl.pallas_call(
        _qnet_kernel,
        out_shape=jax.ShapeDtypeStruct((1, N_out), jnp.float32),
        grid_spec=pltpu.PrefetchScalarGridSpec(
            num_scalar_prefetch=0,
            grid=(G,),
            in_specs=[
                pl.BlockSpec((TM, D), lambda i: (i, 0)),   # fused input rows
                const2d(w1p), const2d(b1),
                const2d(w2b), const2d(b2),
                const2d(w3b), const2d(b3),
                const2d(w4r), const2d(b4p1),
            ],
            out_specs=pl.BlockSpec((1, TM), lambda i: (0, i)),
        ),
        compiler_params=pltpu.CompilerParams(
            dimension_semantics=("parallel",)),
        cost_estimate=pl.CostEstimate(
            flops=flops, transcendentals=0, bytes_accessed=bytes_accessed),
    )(x2, *weight_args)

    out = out[0, :N].reshape(B, S)
    if S == 1:                           # final torch.squeeze(out, dim=-1)
        out = out[:, 0]
    return out


def _reference_forward(x, params):
    """Pure-JAX f32 reference matching the PyTorch module."""
    if x.ndim == 2:
        x = x[None]
    ws_tag = x[:, :, -1]
    h = x[:, :, :-1]
    w1, b1, w2, b2, w3, b3, w4, b4 = params
    h = jnp.maximum(h @ w1 + b1[0], 0.0)
    h = jnp.maximum(h @ w2 + b2[0], 0.0)
    h = jnp.maximum(h @ w3 + b3[0], 0.0)
    y = h @ w4 + b4[0]                   # (B, S, 1)
    out = (jnp.squeeze(y, -1) + 1.0) * ws_tag
    if out.shape[-1] == 1:
        out = jnp.squeeze(out, -1)
    return out


if __name__ == "__main__":
    # input_size = 33 (32 features + trailing ws_tag column), hidden_size = 32,
    # batch B = 2, candidate/sequence dim S = 8.
    input_size = 33
    hidden_size = 32
    B, S = 2, 8

    key = jax.random.PRNGKey(0)
    kx, kp = jax.random.split(key)
    x = jax.random.normal(kx, (B, S, input_size), jnp.float32)
    params = init_qnet_params(kp, input_size, hidden_size)

    out = jax.block_until_ready(qnet_forward(x, params))
    ref = _reference_forward(x, params)

    assert out.shape == ref.shape == (B, S), out.shape
    # bf16 MXU operands (with f32 accumulation) => compare against the pure-f32
    # reference with a tolerance sized for bf16 operand rounding.
    err = float(jnp.max(jnp.abs(out - ref)))
    scale = 1.0 + float(jnp.max(jnp.abs(ref)))
    assert err < 5e-2 * scale, (err, scale)

    print("KERNEL_OK")
</pallas_src>

<mosaic_0001>
module attributes {stable_mosaic.version = 11 : i64} {
  func.func @_qnet_kernel(%arg0: i32, %arg1: memref<128x33xf32, #tpu.memory_space<vmem>>, %arg2: memref<33x32xbf16, #tpu.memory_space<vmem>>, %arg3: memref<1x32xf32, #tpu.memory_space<vmem>>, %arg4: memref<32x32xbf16, #tpu.memory_space<vmem>>, %arg5: memref<1x32xf32, #tpu.memory_space<vmem>>, %arg6: memref<32x16xbf16, #tpu.memory_space<vmem>>, %arg7: memref<1x16xf32, #tpu.memory_space<vmem>>, %arg8: memref<1x16xbf16, #tpu.memory_space<vmem>>, %arg9: memref<1x1xf32, #tpu.memory_space<vmem>>, %arg10: memref<1x128xf32, #tpu.memory_space<vmem>>) attributes {dimension_semantics = [#tpu.dimension_semantics<parallel>], iteration_bounds = array<i64: 1>, scalar_prefetch = 0 : i64, scratch_operands = 0 : i64, tpu.core_type = #tpu.core_type<tc>, window_params = [{transform_indices = @transform_0, window_bounds = array<i64: 128, 33>}, {pipeline_mode = #tpu.pipeline_mode<synchronous>, transform_indices = @transform_1, window_bounds = array<i64: 33, 32>}, {pipeline_mode = #tpu.pipeline_mode<synchronous>, transform_indices = @transform_2, window_bounds = array<i64: 1, 32>}, {pipeline_mode = #tpu.pipeline_mode<synchronous>, transform_indices = @transform_3, window_bounds = array<i64: 32, 32>}, {pipeline_mode = #tpu.pipeline_mode<synchronous>, transform_indices = @transform_4, window_bounds = array<i64: 1, 32>}, {pipeline_mode = #tpu.pipeline_mode<synchronous>, transform_indices = @transform_5, window_bounds = array<i64: 32, 16>}, {pipeline_mode = #tpu.pipeline_mode<synchronous>, transform_indices = @transform_6, window_bounds = array<i64: 1, 16>}, {pipeline_mode = #tpu.pipeline_mode<synchronous>, transform_indices = @transform_7, window_bounds = array<i64: 1, 16>}, {pipeline_mode = #tpu.pipeline_mode<synchronous>, transform_indices = @transform_8, window_bounds = array<i64: 1, 1>}, {transform_indices = @transform_9, window_bounds = array<i64: 1, 128>}]} {
    %c0 = arith.constant 0 : index
    %c0_0 = arith.constant 0 : index
    %0 = vector.load %arg1[%c0, %c0_0] : memref<128x33xf32, #tpu.memory_space<vmem>>, vector<128x33xf32>
    %1 = arith.truncf %0 : vector<128x33xf32> to vector<128x33xbf16>
    %c0_1 = arith.constant 0 : index
    %c0_2 = arith.constant 0 : index
    %2 = vector.load %arg2[%c0_1, %c0_2] : memref<33x32xbf16, #tpu.memory_space<vmem>>, vector<33x32xbf16>
    %cst = arith.constant dense<0.000000e+00> : vector<128x32xf32>
    %3 = tpu.matmul %1, %2, %cst {dimension_numbers = #tpu.dot_dimension_numbers<[1], [0], [0], [1], [0, 0, 1, 1], [], []>} : vector<128x33xbf16>, vector<33x32xbf16>, vector<128x32xf32> -> vector<128x32xf32>
    %c0_3 = arith.constant 0 : index
    %c0_4 = arith.constant 0 : index
    %4 = vector.load %arg3[%c0_3, %c0_4] : memref<1x32xf32, #tpu.memory_space<vmem>>, vector<1x32xf32>
    %5 = vector.broadcast %4 : vector<1x32xf32> to vector<128x32xf32>
    %6 = arith.addf %3, %5 : vector<128x32xf32>
    %cst_5 = arith.constant 0.000000e+00 : f32
    %7 = vector.broadcast %cst_5 : f32 to vector<128x32xf32>
    %8 = arith.maximumf %6, %7 : vector<128x32xf32>
    %9 = arith.truncf %8 : vector<128x32xf32> to vector<128x32xbf16>
    %c0_6 = arith.constant 0 : index
    %c0_7 = arith.constant 0 : index
    %10 = vector.load %arg4[%c0_6, %c0_7] : memref<32x32xbf16, #tpu.memory_space<vmem>>, vector<32x32xbf16>
    %cst_8 = arith.constant dense<0.000000e+00> : vector<128x32xf32>
    %11 = tpu.matmul %9, %10, %cst_8 {dimension_numbers = #tpu.dot_dimension_numbers<[1], [0], [0], [1], [0, 0, 1, 1], [], []>} : vector<128x32xbf16>, vector<32x32xbf16>, vector<128x32xf32> -> vector<128x32xf32>
    %c0_9 = arith.constant 0 : index
    %c0_10 = arith.constant 0 : index
    %12 = vector.load %arg5[%c0_9, %c0_10] : memref<1x32xf32, #tpu.memory_space<vmem>>, vector<1x32xf32>
    %13 = vector.broadcast %12 : vector<1x32xf32> to vector<128x32xf32>
    %14 = arith.addf %11, %13 : vector<128x32xf32>
    %cst_11 = arith.constant 0.000000e+00 : f32
    %15 = vector.broadcast %cst_11 : f32 to vector<128x32xf32>
    %16 = arith.maximumf %14, %15 : vector<128x32xf32>
    %17 = arith.truncf %16 : vector<128x32xf32> to vector<128x32xbf16>
    %c0_12 = arith.constant 0 : index
    %c0_13 = arith.constant 0 : index
    %18 = vector.load %arg6[%c0_12, %c0_13] : memref<32x16xbf16, #tpu.memory_space<vmem>>, vector<32x16xbf16>
    %cst_14 = arith.constant dense<0.000000e+00> : vector<128x16xf32>
    %19 = tpu.matmul %17, %18, %cst_14 {dimension_numbers = #tpu.dot_dimension_numbers<[1], [0], [0], [1], [0, 0, 1, 1], [], []>} : vector<128x32xbf16>, vector<32x16xbf16>, vector<128x16xf32> -> vector<128x16xf32>
    %c0_15 = arith.constant 0 : index
    %c0_16 = arith.constant 0 : index
    %20 = vector.load %arg7[%c0_15, %c0_16] : memref<1x16xf32, #tpu.memory_space<vmem>>, vector<1x16xf32>
    %21 = vector.broadcast %20 : vector<1x16xf32> to vector<128x16xf32>
    %22 = arith.addf %19, %21 : vector<128x16xf32>
    %cst_17 = arith.constant 0.000000e+00 : f32
    %23 = vector.broadcast %cst_17 : f32 to vector<128x16xf32>
    %24 = arith.maximumf %22, %23 : vector<128x16xf32>
    %c0_18 = arith.constant 0 : index
    %c0_19 = arith.constant 0 : index
    %25 = vector.load %arg8[%c0_18, %c0_19] : memref<1x16xbf16, #tpu.memory_space<vmem>>, vector<1x16xbf16>
    %26 = arith.truncf %24 : vector<128x16xf32> to vector<128x16xbf16>
    %cst_20 = arith.constant dense<0.000000e+00> : vector<1x128xf32>
    %27 = tpu.matmul %25, %26, %cst_20 {dimension_numbers = #tpu.dot_dimension_numbers<[1], [1], [0], [0], [0, 0, 1, 0], [], []>} : vector<1x16xbf16>, vector<128x16xbf16>, vector<1x128xf32> -> vector<1x128xf32>
    %28 = vector.extract_strided_slice %0 {offsets = [0, 32], sizes = [128, 1], strides = [1, 1]} : vector<128x33xf32> to vector<128x1xf32>
    %29 = tpu.transpose %28, [1, 0] : vector<128x1xf32> -> vector<1x128xf32>
    %c0_21 = arith.constant 0 : index
    %c0_22 = arith.constant 0 : index
    %30 = vector.load %arg9[%c0_21, %c0_22] : memref<1x1xf32, #tpu.memory_space<vmem>>, vector<1x1xf32>
    %31 = vector.broadcast %30 : vector<1x1xf32> to vector<1x128xf32>
    %32 = arith.addf %27, %31 : vector<1x128xf32>
    %33 = arith.mulf %32, %29 : vector<1x128xf32>
    %c0_23 = arith.constant 0 : index
    %c0_24 = arith.constant 0 : index
    %34 = vector.load %arg10[%c0_23, %c0_24] : memref<1x128xf32, #tpu.memory_space<vmem>>, vector<1x128xf32>
    tpu.vector_store %arg10[%c0_23, %c0_24], %33 {strides = array<i32>} : memref<1x128xf32, #tpu.memory_space<vmem>>, vector<1x128xf32>,
    return
  }
  func.func @transform_0(%arg0: i32) -> (i32, i32) {
    %c0_i32 = arith.constant 0 : i32
    %c0_i32_0 = arith.constant 0 : i32
    return %arg0, %c0_i32 : i32, i32
  }
  func.func @transform_1(%arg0: i32) -> (i32, i32) {
    %c0_i32 = arith.constant 0 : i32
    %c0_i32_0 = arith.constant 0 : i32
    %c0_i32_1 = arith.constant 0 : i32
    return %c0_i32, %c0_i32_0 : i32, i32
  }
  func.func @transform_2(%arg0: i32) -> (i32, i32) {
    %c0_i32 = arith.constant 0 : i32
    %c0_i32_0 = arith.constant 0 : i32
    %c0_i32_1 = arith.constant 0 : i32
    return %c0_i32, %c0_i32_0 : i32, i32
  }
  func.func @transform_3(%arg0: i32) -> (i32, i32) {
    %c0_i32 = arith.constant 0 : i32
    %c0_i32_0 = arith.constant 0 : i32
    %c0_i32_1 = arith.constant 0 : i32
    return %c0_i32, %c0_i32_0 : i32, i32
  }
  func.func @transform_4(%arg0: i32) -> (i32, i32) {
    %c0_i32 = arith.constant 0 : i32
    %c0_i32_0 = arith.constant 0 : i32
    %c0_i32_1 = arith.constant 0 : i32
    return %c0_i32, %c0_i32_0 : i32, i32
  }
  func.func @transform_5(%arg0: i32) -> (i32, i32) {
    %c0_i32 = arith.constant 0 : i32
    %c0_i32_0 = arith.constant 0 : i32
    %c0_i32_1 = arith.constant 0 : i32
    return %c0_i32, %c0_i32_0 : i32, i32
  }
  func.func @transform_6(%arg0: i32) -> (i32, i32) {
    %c0_i32 = arith.constant 0 : i32
    %c0_i32_0 = arith.constant 0 : i32
    %c0_i32_1 = arith.constant 0 : i32
    return %c0_i32, %c0_i32_0 : i32, i32
  }
  func.func @transform_7(%arg0: i32) -> (i32, i32) {
    %c0_i32 = arith.constant 0 : i32
    %c0_i32_0 = arith.constant 0 : i32
    %c0_i32_1 = arith.constant 0 : i32
    return %c0_i32, %c0_i32_0 : i32, i32
  }
  func.func @transform_8(%arg0: i32) -> (i32, i32) {
    %c0_i32 = arith.constant 0 : i32
    %c0_i32_0 = arith.constant 0 : i32
    %c0_i32_1 = arith.constant 0 : i32
    return %c0_i32, %c0_i32_0 : i32, i32
  }
  func.func @transform_9(%arg0: i32) -> (i32, i32) {
    %c0_i32 = arith.constant 0 : i32
    %c0_i32_0 = arith.constant 0 : i32
    return %c0_i32, %arg0 : i32, i32
  }
}

</mosaic_0001>

<llo_original>
// kernel: squeeze.1
$region0: #{squeeze.1}
  %s0 = inlined_call_operand.vmem [shape: f32[16], index: 0, kind: input, shape index: {}]
  %s1 = inlined_call_operand.hbm [shape: f32[2,8], index: 1, kind: output, shape index: {}]
  $region1: #{squeeze.1} parent=0
    #allocation0 [shape = 'u8[1024]{0}', space=vmem, size = 0x400, scoped, tag = 'operand span for operand 1']
    #allocation1 [shape = 's32[1]{0}', space=sflag, size = 0x4, scoped, tag = 'scoped memory for squeeze.1']
    #allocation2 [shape = 'u8[4096]{0}', space=vmem, size = 0x1000, scoped, tag = 'scoped mem for output reshape']
    #allocation3 [shape = 'u8[4096]{0}', space=vmem, size = 0x1000, scoped, tag = 'scoped mem for input reshape']
    %2 = vsyncpa [#allocation1], 0
    %s4 = ssub.s32 2, 1
    %v5 = vld [vmem:[%s0] sm:%s4]
    %6 = vst [vmem:[#allocation3] sm:%s4] %v5
    %v7 = vld [vmem:[#allocation3] sm:$0x1]
    %vm8 = vcmask 64512
    %9 = vst.msk [vmem:[#allocation2] sm:$0x1] %vm8, %v7
    %v10 = vld [vmem:[#allocation3] sm:$0x1]
    %11 = vrot.lane.b32.xlu0 %v10, 120
    %v12 = vpop.permute.xlu0 %11
    %vm13 = vcmask 64512
    %s14 = scalar_lea.vmem [#allocation2], 1
    %15 = vst.msk [vmem:[%s14] sm:$0x1] %vm13, %v12
    %s17 = ssub.s32 4, 1
    %v18 = vld [vmem:[#allocation2] sm:%s17]
    %s20 = ssub.s32 4, 1
    %21 = vst [vmem:[#allocation0] sm:%s20] %v18
    %23 = vsyncadd [#allocation1], 0
    %s25 = sshll.u32 [#allocation0], 4
    %s26 = int_to_ptr.vmem [resolvable:$true] %s25
    %s27 = sshll.u32 %s1, 4
    %s28 = int_to_ptr.hbm [resolvable:$true] %s27
    %30 = dma.vmem_to_hbm [thread:$0]  %s26, 32, %s28, [#allocation1]
    %32 = dma.done [#allocation1], 32
    %33 = vsyncpa [#allocation1], 1

// kernel: qnet_forward.1
$region0: #{qnet_forward.1}
  #allocation0 [shape = 'u32[]', space=smem, size = 0x4, offset = 0x4, fixed_abs, tag = 'smem constant byte address 0x4 - core index']
  #allocation1 [shape = 'u32[72,128]{1,0:T(1,128)}', space=vmem, size = 0x9000, scoped, tag = 'internal scratch']
  #allocation2 [shape = 'f32[1,1]{1,0:T(1,128)S(1)}', space=vmem, size = 0x200, scoped, tag = 'scoped memory for qnet_forward.1']
  %s0 = inlined_call_operand.vmem [shape: f32[128,33], index: 0, kind: input, shape index: {}]
  %s1 = inlined_call_operand.vmem [shape: bf16[33,32], index: 1, kind: input, shape index: {}]
  %s2 = inlined_call_operand.vmem [shape: f32[1,32], index: 2, kind: input, shape index: {}]
  %s3 = inlined_call_operand.vmem [shape: bf16[32,32], index: 3, kind: input, shape index: {}]
  %s4 = inlined_call_operand.vmem [shape: f32[1,32], index: 4, kind: input, shape index: {}]
  %s5 = inlined_call_operand.vmem [shape: bf16[32,16], index: 5, kind: input, shape index: {}]
  %s6 = inlined_call_operand.vmem [shape: f32[1,16], index: 6, kind: input, shape index: {}]
  %s7 = inlined_call_operand.vmem [shape: bf16[1,16], index: 7, kind: input, shape index: {}]
  %s8 = inlined_call_operand.<no memory space> [shape: f32[1,1], index: 8, kind: input, shape index: {}]
  %s9 = inlined_call_operand.vmem [shape: f32[1,128], index: 9, kind: output, shape index: {}]
  %s10 = sld [smem:[#allocation0]]
  $region46: #{qnet_forward.1} parent=0
    _
  %s12 = ssub.s32 1, %s10
  %s13 = scalar_select 0, %s12, %s10
  %v14 = vstv %s8
  %15 = vst [vmem:[#allocation2] sm:$0x1] %v14
  // Predicated region
  $region2: #{qnet_forward.1} parent=0 // pred_check
    _
  $region3: #{qnet_forward.1} parent=0 // pred_check_branch
    %17 = sbr.rel (0) target = $region5
  $region4: #{qnet_forward.1} parent=0 // pred_region
    _
  $region5: #{qnet_forward.1} parent=0 // pred_fallthru
    _
  // Predicated region
  $region6: #{qnet_forward.1} parent=0 // pred_check
    _
  $region7: #{qnet_forward.1} parent=0 // pred_check_branch
    %19 = sbr.rel (0) target = $region9
  $region8: #{qnet_forward.1} parent=0 // pred_region
    _
  $region9: #{qnet_forward.1} parent=0 // pred_fallthru
    _
  // Predicated region
  $region10: #{qnet_forward.1} parent=0 // pred_check
    _
  $region11: #{qnet_forward.1} parent=0 // pred_check_branch
    %21 = sbr.rel (0) target = $region13
  $region12: #{qnet_forward.1} parent=0 // pred_region
    _
  $region13: #{qnet_forward.1} parent=0 // pred_fallthru
    _
  // Predicated region
  $region14: #{qnet_forward.1} parent=0 // pred_check
    _
  $region15: #{qnet_forward.1} parent=0 // pred_check_branch
    %23 = sbr.rel (0) target = $region17
  $region16: #{qnet_forward.1} parent=0 // pred_region
    _
  $region17: #{qnet_forward.1} parent=0 // pred_fallthru
    _
  // Predicated region
  $region18: #{qnet_forward.1} parent=0 // pred_check
    _
  $region19: #{qnet_forward.1} parent=0 // pred_check_branch
    %25 = sbr.rel (0) target = $region21
  $region20: #{qnet_forward.1} parent=0 // pred_region
    _
  $region21: #{qnet_forward.1} parent=0 // pred_fallthru
    _
  // Predicated region
  $region22: #{qnet_forward.1} parent=0 // pred_check
    _
  $region23: #{qnet_forward.1} parent=0 // pred_check_branch
    %27 = sbr.rel (0) target = $region25
  $region24: #{qnet_forward.1} parent=0 // pred_region
    _
  $region25: #{qnet_forward.1} parent=0 // pred_fallthru
    _
  // Predicated region
  $region26: #{qnet_forward.1} parent=0 // pred_check
    _
  $region27: #{qnet_forward.1} parent=0 // pred_check_branch
    %29 = sbr.rel (0) target = $region29
  $region28: #{qnet_forward.1} parent=0 // pred_region
    _
  $region29: #{qnet_forward.1} parent=0 // pred_fallthru
    _
  // Predicated region
  $region30: #{qnet_forward.1} parent=0 // pred_check
    _
  $region31: #{qnet_forward.1} parent=0 // pred_check_branch
    %31 = sbr.rel (0) target = $region33
  $region32: #{qnet_forward.1} parent=0 // pred_region
    _
  $region33: #{qnet_forward.1} parent=0 // pred_fallthru
    _
  // Predicated region
  $region34: #{qnet_forward.1} parent=0 // pred_check
    _
  $region35: #{qnet_forward.1} parent=0 // pred_check_branch
    %33 = sbr.rel (0) target = $region37
  $region36: #{qnet_forward.1} parent=0 // pred_region
    _
  $region37: #{qnet_forward.1} parent=0 // pred_fallthru
    _
  %v35 = vld [vmem:[%s0] sm:$0xff]
  %v36 = vld [vmem:[%s0 + $0x8] sm:$0xff]
  %v37 = vld [vmem:[%s0 + $0x10] sm:$0xff]
  %v38 = vld [vmem:[%s0 + $0x18] sm:$0xff]
  %v39 = vld [vmem:[%s0 + $0x20] sm:$0xff]
  %v40 = vld [vmem:[%s0 + $0x28] sm:$0xff]
  %v41 = vld [vmem:[%s0 + $0x30] sm:$0xff]
  %v42 = vld [vmem:[%s0 + $0x38] sm:$0xff]
  %v43 = vld [vmem:[%s0 + $0x40] sm:$0xff]
  %v44 = vld [vmem:[%s0 + $0x48] sm:$0xff]
  %v45 = vld [vmem:[%s0 + $0x50] sm:$0xff]
  %v46 = vld [vmem:[%s0 + $0x58] sm:$0xff]
  %v47 = vld [vmem:[%s0 + $0x60] sm:$0xff]
  %v48 = vld [vmem:[%s0 + $0x68] sm:$0xff]
  %v49 = vld [vmem:[%s0 + $0x70] sm:$0xff]
  %v50 = vld [vmem:[%s0 + $0x78] sm:$0xff]
  %v51 = vpack.c.bf16 %v36, %v35
  %v52 = vpack.c.bf16 %v38, %v37
  %v53 = vpack.c.bf16 %v40, %v39
  %v54 = vpack.c.bf16 %v42, %v41
  %v55 = vpack.c.bf16 %v44, %v43
  %v56 = vpack.c.bf16 %v46, %v45
  %v57 = vpack.c.bf16 %v48, %v47
  %v58 = vpack.c.bf16 %v50, %v49
  %v59 = vld [vmem:[%s1] sm:$0xf]
  %v60 = vld [vmem:[%s1 + $0x4] sm:$0xf]
  %v61 = vld [vmem:[%s1 + $0x8] sm:$0xf]
  %v62 = vld [vmem:[%s1 + $0xc] sm:$0xf]
  %v63 = vld [vmem:[%s1 + $0x10] sm:$0x1]
  %v64 = vld [vmem:[%s2] sm:$0x1]
  %v66 = vperm.slane %v64, 0
  %v73 = vunpack.c.l.b16 %v59
  %v74 = vunpack.c.l.b16 %v60
  %v75 = vunpack.c.l.b16 %v61
  %v76 = vunpack.c.l.b16 %v62
  %v77 = vunpack.c.l.b16 %v63
  %v78 = vpack.c.b16 %v74, %v73
  %v79 = vpack.c.b16 %v76, %v75
  %v80 = vpack.c.b16 %v77, %v77
  %vm83 = vcmask 269312
  %v85 = vsel %vm83, %v51, 0
  %v88 = vsel %vm83, %v52, 0
  %v91 = vsel %vm83, %v53, 0
  %v94 = vsel %vm83, %v54, 0
  %v97 = vsel %vm83, %v55, 0
  %v100 = vsel %vm83, %v56, 0
  %v103 = vsel %vm83, %v57, 0
  %v106 = vsel %vm83, %v58, 0
  %vm108 = vcmask 1040384
  %v109 = vsel 0, 4294967295, 65535
  %v110 = vsel %vm108, %v109, 0
  %v112 = vand.u32 %v80, %v110
  %114 = vmatpush.bf16.msra.mxu0 0
  %115 = vmatpush.bf16.msra.mxu0 0
  %116 = vmatpush.bf16.msra.mxu0 0
  %117 = vmatpush.bf16.msra.mxu0 0
  %118 = vmatpush.bf16.msra.mxu0 0
  %119 = vmatpush.bf16.msra.mxu0 %v112
  %120 = vmatpush.bf16.msra.mxu0 %v79
  %121 = vmatpush.bf16.msra.mxu0 %v78
  %122 = vmatmul.bf16.gmra.mxu0 %v85
  %v123 = vpop.f32.mrf.mxu0
  %v124 = vadd.f32 %v66, %v123
  %v125 = vpop.f32.mrf.mxu0
  %v126 = vadd.f32 %v66, %v125
  %127 = vmatmul.bf16.gmra.mxu0 %v88
  %v128 = vpop.f32.mrf.mxu0
  %v129 = vadd.f32 %v66, %v128
  %v130 = vpop.f32.mrf.mxu0
  %v131 = vadd.f32 %v66, %v130
  %132 = vmatmul.bf16.gmra.mxu0 %v91
  %v133 = vpop.f32.mrf.mxu0
  %v134 = vadd.f32 %v66, %v133
  %v135 = vpop.f32.mrf.mxu0
  %v136 = vadd.f32 %v66, %v135
  %137 = vmatmul.bf16.gmra.mxu0 %v94
  %v138 = vpop.f32.mrf.mxu0
  %v139 = vadd.f32 %v66, %v138
  %v140 = vpop.f32.mrf.mxu0
  %v141 = vadd.f32 %v66, %v140
  %142 = vmatmul.bf16.gmra.mxu0 %v97
  %v143 = vpop.f32.mrf.mxu0
  %v144 = vadd.f32 %v66, %v143
  %v145 = vpop.f32.mrf.mxu0
  %v146 = vadd.f32 %v66, %v145
  %147 = vmatmul.bf16.gmra.mxu0 %v100
  %v148 = vpop.f32.mrf.mxu0
  %v149 = vadd.f32 %v66, %v148
  %v150 = vpop.f32.mrf.mxu0
  %v151 = vadd.f32 %v66, %v150
  %152 = vmatmul.bf16.gmra.mxu0 %v103
  %v153 = vpop.f32.mrf.mxu0
  %v154 = vadd.f32 %v66, %v153
  %v155 = vpop.f32.mrf.mxu0
  %v156 = vadd.f32 %v66, %v155
  %157 = vmatmul.bf16.gmra.mxu0 %v106
  %v158 = vpop.f32.mrf.mxu0
  %v159 = vadd.f32 %v66, %v158
  %v160 = vpop.f32.mrf.mxu0
  %v161 = vadd.f32 %v66, %v160
  %162 = vdwg.mxu0
  %v163 = vmax.f32 %v124, 0.0
  %v164 = vmax.f32 %v126, 0.0
  %v165 = vmax.f32 %v129, 0.0
  %v166 = vmax.f32 %v131, 0.0
  %v167 = vmax.f32 %v134, 0.0
  %v168 = vmax.f32 %v136, 0.0
  %v169 = vmax.f32 %v139, 0.0
  %v170 = vmax.f32 %v141, 0.0
  %v171 = vmax.f32 %v144, 0.0
  %v172 = vmax.f32 %v146, 0.0
  %v173 = vmax.f32 %v149, 0.0
  %v174 = vmax.f32 %v151, 0.0
  %v175 = vmax.f32 %v154, 0.0
  %v176 = vmax.f32 %v156, 0.0
  %v177 = vmax.f32 %v159, 0.0
  %v178 = vmax.f32 %v161, 0.0
  %v179 = vpack.c.bf16 %v164, %v163
  %v180 = vpack.c.bf16 %v166, %v165
  %v181 = vpack.c.bf16 %v168, %v167
  %v182 = vpack.c.bf16 %v170, %v169
  %v183 = vpack.c.bf16 %v172, %v171
  %v184 = vpack.c.bf16 %v174, %v173
  %v185 = vpack.c.bf16 %v176, %v175
  %v186 = vpack.c.bf16 %v178, %v177
  %v187 = vld [vmem:[%s3] sm:$0xf]
  %v188 = vld [vmem:[%s3 + $0x4] sm:$0xf]
  %v189 = vld [vmem:[%s3 + $0x8] sm:$0xf]
  %v190 = vld [vmem:[%s3 + $0xc] sm:$0xf]
  %v191 = vld [vmem:[%s4] sm:$0x1]
  %v193 = vperm.slane %v191, 0
  %v199 = vunpack.c.l.b16 %v187
  %v200 = vunpack.c.l.b16 %v188
  %v201 = vunpack.c.l.b16 %v189
  %v202 = vunpack.c.l.b16 %v190
  %v203 = vpack.c.b16 %v200, %v199
  %v204 = vpack.c.b16 %v202, %v201
  %vm207 = vcmask 261120
  %v209 = vsel %vm207, %v179, 0
  %v212 = vsel %vm207, %v180, 0
  %v215 = vsel %vm207, %v181, 0
  %v218 = vsel %vm207, %v182, 0
  %v221 = vsel %vm207, %v183, 0
  %v224 = vsel %vm207, %v184, 0
  %v227 = vsel %vm207, %v185, 0
  %v230 = vsel %vm207, %v186, 0
  %232 = vmatpush.bf16.msra.mxu0 0
  %233 = vmatpush.bf16.msra.mxu0 0
  %234 = vmatpush.bf16.msra.mxu0 0
  %235 = vmatpush.bf16.msra.mxu0 0
  %236 = vmatpush.bf16.msra.mxu0 0
  %237 = vmatpush.bf16.msra.mxu0 0
  %238 = vmatpush.bf16.msra.mxu0 %v204
  %239 = vmatpush.bf16.msra.mxu0 %v203
  %240 = vmatmul.bf16.gmra.mxu0 %v209
  %v241 = vpop.f32.mrf.mxu0
  %v242 = vadd.f32 %v193, %v241
  %v243 = vpop.f32.mrf.mxu0
  %v244 = vadd.f32 %v193, %v243
  %245 = vmatmul.bf16.gmra.mxu0 %v212
  %v246 = vpop.f32.mrf.mxu0
  %v247 = vadd.f32 %v193, %v246
  %v248 = vpop.f32.mrf.mxu0
  %v249 = vadd.f32 %v193, %v248
  %250 = vmatmul.bf16.gmra.mxu0 %v215
  %v251 = vpop.f32.mrf.mxu0
  %v252 = vadd.f32 %v193, %v251
  %v253 = vpop.f32.mrf.mxu0
  %v254 = vadd.f32 %v193, %v253
  %255 = vmatmul.bf16.gmra.mxu0 %v218
  %v256 = vpop.f32.mrf.mxu0
  %v257 = vadd.f32 %v193, %v256
  %v258 = vpop.f32.mrf.mxu0
  %v259 = vadd.f32 %v193, %v258
  %260 = vmatmul.bf16.gmra.mxu0 %v221
  %v261 = vpop.f32.mrf.mxu0
  %v262 = vadd.f32 %v193, %v261
  %v263 = vpop.f32.mrf.mxu0
  %v264 = vadd.f32 %v193, %v263
  %265 = vmatmul.bf16.gmra.mxu0 %v224
  %v266 = vpop.f32.mrf.mxu0
  %v267 = vadd.f32 %v193, %v266
  %v268 = vpop.f32.mrf.mxu0
  %v269 = vadd.f32 %v193, %v268
  %270 = vmatmul.bf16.gmra.mxu0 %v227
  %v271 = vpop.f32.mrf.mxu0
  %v272 = vadd.f32 %v193, %v271
  %v273 = vpop.f32.mrf.mxu0
  %v274 = vadd.f32 %v193, %v273
  %275 = vmatmul.bf16.gmra.mxu0 %v230
  %v276 = vpop.f32.mrf.mxu0
  %v277 = vadd.f32 %v193, %v276
  %v278 = vpop.f32.mrf.mxu0
  %v279 = vadd.f32 %v193, %v278
  %280 = vdwg.mxu0
  %v281 = vmax.f32 %v242, 0.0
  %v282 = vmax.f32 %v244, 0.0
  %v283 = vmax.f32 %v247, 0.0
  %v284 = vmax.f32 %v249, 0.0
  %v285 = vmax.f32 %v252, 0.0
  %v286 = vmax.f32 %v254, 0.0
  %v287 = vmax.f32 %v257, 0.0
  %v288 = vmax.f32 %v259, 0.0
  %v289 = vmax.f32 %v262, 0.0
  %v290 = vmax.f32 %v264, 0.0
  %v291 = vmax.f32 %v267, 0.0
  %v292 = vmax.f32 %v269, 0.0
  %v293 = vmax.f32 %v272, 0.0
  %v294 = vmax.f32 %v274, 0.0
  %v295 = vmax.f32 %v277, 0.0
  %v296 = vmax.f32 %v279, 0.0
  %v297 = vpack.c.bf16 %v282, %v281
  %v298 = vpack.c.bf16 %v284, %v283
  %v299 = vpack.c.bf16 %v286, %v285
  %v300 = vpack.c.bf16 %v288, %v287
  %v301 = vpack.c.bf16 %v290, %v289
  %v302 = vpack.c.bf16 %v292, %v291
  %v303 = vpack.c.bf16 %v294, %v293
  %v304 = vpack.c.bf16 %v296, %v295
  %v305 = vld [vmem:[%s5] sm:$0xf]
  %v306 = vld [vmem:[%s5 + $0x4] sm:$0xf]
  %v307 = vld [vmem:[%s5 + $0x8] sm:$0xf]
  %v308 = vld [vmem:[%s5 + $0xc] sm:$0xf]
  %v309 = vld [vmem:[%s6] sm:$0x1]
  %v311 = vperm.slane %v309, 0
  %v317 = vunpack.c.l.b16 %v305
  %v318 = vunpack.c.l.b16 %v306
  %v319 = vunpack.c.l.b16 %v307
  %v320 = vunpack.c.l.b16 %v308
  %v321 = vpack.c.b16 %v318, %v317
  %v322 = vpack.c.b16 %v320, %v319
  %v326 = vsel %vm207, %v297, 0
  %v329 = vsel %vm207, %v298, 0
  %v332 = vsel %vm207, %v299, 0
  %v335 = vsel %vm207, %v300, 0
  %v338 = vsel %vm207, %v301, 0
  %v341 = vsel %vm207, %v302, 0
  %v344 = vsel %vm207, %v303, 0
  %v347 = vsel %vm207, %v304, 0
  %349 = vmatpush.bf16.msra.mxu0 0
  %350 = vmatpush.bf16.msra.mxu0 0
  %351 = vmatpush.bf16.msra.mxu0 0
  %352 = vmatpush.bf16.msra.mxu0 0
  %353 = vmatpush.bf16.msra.mxu0 0
  %354 = vmatpush.bf16.msra.mxu0 0
  %355 = vmatpush.bf16.msra.mxu0 %v322
  %356 = vmatpush.bf16.msra.mxu0 %v321
  %357 = vmatmul.bf16.gmra.mxu0 %v326
  %v358 = vpop.f32.mrf.mxu0
  %v359 = vadd.f32 %v311, %v358
  %v360 = vpop.f32.mrf.mxu0
  %v361 = vadd.f32 %v311, %v360
  %362 = vmatmul.bf16.gmra.mxu0 %v329
  %v363 = vpop.f32.mrf.mxu0
  %v364 = vadd.f32 %v311, %v363
  %v365 = vpop.f32.mrf.mxu0
  %v366 = vadd.f32 %v311, %v365
  %367 = vmatmul.bf16.gmra.mxu0 %v332
  %v368 = vpop.f32.mrf.mxu0
  %v369 = vadd.f32 %v311, %v368
  %v370 = vpop.f32.mrf.mxu0
  %v371 = vadd.f32 %v311, %v370
  %372 = vmatmul.bf16.gmra.mxu0 %v335
  %v373 = vpop.f32.mrf.mxu0
  %v374 = vadd.f32 %v311, %v373
  %v375 = vpop.f32.mrf.mxu0
  %v376 = vadd.f32 %v311, %v375
  %377 = vmatmul.bf16.gmra.mxu0 %v338
  %v378 = vpop.f32.mrf.mxu0
  %v379 = vadd.f32 %v311, %v378
  %v380 = vpop.f32.mrf.mxu0
  %v381 = vadd.f32 %v311, %v380
  %382 = vmatmul.bf16.gmra.mxu0 %v341
  %v383 = vpop.f32.mrf.mxu0
  %v384 = vadd.f32 %v311, %v383
  %v385 = vpop.f32.mrf.mxu0
  %v386 = vadd.f32 %v311, %v385
  %387 = vmatmul.bf16.gmra.mxu0 %v344
  %v388 = vpop.f32.mrf.mxu0
  %v389 = vadd.f32 %v311, %v388
  %v390 = vpop.f32.mrf.mxu0
  %v391 = vadd.f32 %v311, %v390
  %392 = vmatmul.bf16.gmra.mxu0 %v347
  %v393 = vpop.f32.mrf.mxu0
  %v394 = vadd.f32 %v311, %v393
  %v395 = vpop.f32.mrf.mxu0
  %v396 = vadd.f32 %v311, %v395
  %397 = vdwg.mxu0
  %v398 = vmax.f32 %v359, 0.0
  %v399 = vmax.f32 %v361, 0.0
  %v400 = vmax.f32 %v364, 0.0
  %v401 = vmax.f32 %v366, 0.0
  %v402 = vmax.f32 %v369, 0.0
  %v403 = vmax.f32 %v371, 0.0
  %v404 = vmax.f32 %v374, 0.0
  %v405 = vmax.f32 %v376, 0.0
  %v406 = vmax.f32 %v379, 0.0
  %v407 = vmax.f32 %v381, 0.0
  %v408 = vmax.f32 %v384, 0.0
  %v409 = vmax.f32 %v386, 0.0
  %v410 = vmax.f32 %v389, 0.0
  %v411 = vmax.f32 %v391, 0.0
  %v412 = vmax.f32 %v394, 0.0
  %v413 = vmax.f32 %v396, 0.0
  %v414 = vld [vmem:[%s7] sm:$0x1]
  %v415 = vpack.c.bf16 %v399, %v398
  %v416 = vpack.c.bf16 %v401, %v400
  %v417 = vpack.c.bf16 %v403, %v402
  %v418 = vpack.c.bf16 %v405, %v404
  %v419 = vpack.c.bf16 %v407, %v406
  %v420 = vpack.c.bf16 %v409, %v408
  %v421 = vpack.c.bf16 %v411, %v410
  %v422 = vpack.c.bf16 %v413, %v412
  %439 = vrot.lane.b32.xlu0 %v35, 96
  %v440 = vpop.permute.xlu0 %439
  %441 = vrot.lane.b32.xlu0 %v36, 96
  %v442 = vpop.permute.xlu0 %441
  %443 = vrot.lane.b32.xlu0 %v37, 96
  %v444 = vpop.permute.xlu0 %443
  %445 = vrot.lane.b32.xlu0 %v38, 96
  %v446 = vpop.permute.xlu0 %445
  %447 = vrot.lane.b32.xlu0 %v39, 96
  %v448 = vpop.permute.xlu0 %447
  %449 = vrot.lane.b32.xlu0 %v40, 96
  %v450 = vpop.permute.xlu0 %449
  %451 = vrot.lane.b32.xlu0 %v41, 96
  %v452 = vpop.permute.xlu0 %451
  %453 = vrot.lane.b32.xlu0 %v42, 96
  %v454 = vpop.permute.xlu0 %453
  %455 = vrot.lane.b32.xlu0 %v43, 96
  %v456 = vpop.permute.xlu0 %455
  %457 = vrot.lane.b32.xlu0 %v44, 96
  %v458 = vpop.permute.xlu0 %457
  %459 = vrot.lane.b32.xlu0 %v45, 96
  %v460 = vpop.permute.xlu0 %459
  %461 = vrot.lane.b32.xlu0 %v46, 96
  %v462 = vpop.permute.xlu0 %461
  %463 = vrot.lane.b32.xlu0 %v47, 96
  %v464 = vpop.permute.xlu0 %463
  %465 = vrot.lane.b32.xlu0 %v48, 96
  %v466 = vpop.permute.xlu0 %465
  %467 = vrot.lane.b32.xlu0 %v49, 96
  %v468 = vpop.permute.xlu0 %467
  %469 = vrot.lane.b32.xlu0 %v50, 96
  %v470 = vpop.permute.xlu0 %469
  %487 = vxpose.xlu0.b32.start [1/16] %v440, 128
  %488 = vxpose.xlu0.b32.cont [2/16] %v442, 128
  %489 = vxpose.xlu0.b32.cont [3/16] %v444, 128
  %490 = vxpose.xlu0.b32.cont [4/16] %v446, 128
  %491 = vxpose.xlu0.b32.cont [5/16] %v448, 128
  %492 = vxpose.xlu0.b32.cont [6/16] %v450, 128
  %493 = vxpose.xlu0.b32.cont [7/16] %v452, 128
  %494 = vxpose.xlu0.b32.cont [8/16] %v454, 128
  %495 = vxpose.xlu0.b32.cont [9/16] %v456, 128
  %496 = vxpose.xlu0.b32.cont [10/16] %v458, 128
  %497 = vxpose.xlu0.b32.cont [11/16] %v460, 128
  %498 = vxpose.xlu0.b32.cont [12/16] %v462, 128
  %499 = vxpose.xlu0.b32.cont [13/16] %v464, 128
  %500 = vxpose.xlu0.b32.cont [14/16] %v466, 128
  %501 = vxpose.xlu0.b32.cont [15/16] %v468, 128
  %502 = vxpose.xlu0.b32.end [16/16] %v470, 128
  %v503 = vpop.trf.xlu0
  %v504 = vpop.trf.xlu0
  %v505 = vpop.trf.xlu0
  %v506 = vpop.trf.xlu0
  %v507 = vpop.trf.xlu0
  %v508 = vpop.trf.xlu0
  %v509 = vpop.trf.xlu0
  %v510 = vpop.trf.xlu0
  %v511 = vpop.trf.xlu0
  %v512 = vpop.trf.xlu0
  %v513 = vpop.trf.xlu0
  %v514 = vpop.trf.xlu0
  %v515 = vpop.trf.xlu0
  %v516 = vpop.trf.xlu0
  %v517 = vpop.trf.xlu0
  %v518 = vpop.trf.xlu0
  %v519 = vld [vmem:[#allocation2] sm:$0x1]
  %521 = vset.pattern.permute.xlu0 0
  %522 = vperm.xlu0 %521, %v519
  %v523 = vpop.permute.xlu0 %522
  %v525 = vperm.slane %v523, 0
  %vm526 = vcmask 130048
  %v528 = vsel %vm526, %v414, 0
  %v531 = vsel %vm526, %v415, 0
  %v534 = vsel %vm526, %v416, 0
  %v537 = vsel %vm526, %v417, 0
  %v540 = vsel %vm526, %v418, 0
  %v543 = vsel %vm526, %v419, 0
  %v546 = vsel %vm526, %v420, 0
  %v549 = vsel %vm526, %v421, 0
  %v552 = vsel %vm526, %v422, 0
  %554 = vmatpush.bf16.xpose.msra.mxu0 %v552
  %555 = vmatpush.bf16.xpose.msra.mxu0 %v549
  %556 = vmatpush.bf16.xpose.msra.mxu0 %v546
  %557 = vmatpush.bf16.xpose.msra.mxu0 %v543
  %558 = vmatpush.bf16.xpose.msra.mxu0 %v540
  %559 = vmatpush.bf16.xpose.msra.mxu0 %v537
  %560 = vmatpush.bf16.xpose.msra.mxu0 %v534
  %561 = vmatpush.bf16.xpose.msra.mxu0 %v531
  %562 = vmatmul.bf16.gmra.mxu0 %v528
  %v563 = vpop.f32.mrf.mxu0
  %v564 = vadd.f32 %v525, %v563
  %v565 = vpop.f32.mrf.mxu0
  %566 = vdwg.mxu0
  %v567 = vmul.f32 %v564, %v503
  %568 = vst [vmem:[%s9] sm:$0x1] %v567
  // Predicated region
  $region38: #{qnet_forward.1} parent=0 // pred_check
    _
  $region39: #{qnet_forward.1} parent=0 // pred_check_branch
    %570 = sbr.rel (0) target = $region41
  $region40: #{qnet_forward.1} parent=0 // pred_region
    _
  $region41: #{qnet_forward.1} parent=0 // pred_fallthru
    _
  // Predicated region
  $region42: #{qnet_forward.1} parent=0 // pred_check
    _
  $region43: #{qnet_forward.1} parent=0 // pred_check_branch
    %572 = sbr.rel (0) target = $region45
  $region44: #{qnet_forward.1} parent=0 // pred_region
    _
  $region45: #{qnet_forward.1} parent=0 // pred_fallthru
    _

</llo_original>
